<compile_context>
chip_gen: v6e
topology: v6e:2x2x1
jax: 0.10.0
libtpu: 0.0.40
codegen_flags: <defaults>
</compile_context>

<pallas_src>
import functools

import jax
import jax.numpy as jnp
from jax.experimental import pallas as pl
from jax.experimental.pallas import tpu as pltpu

IGNORE_INDEX = 255
LAM = 0.3  # default lam of LargeMarginSoftmaxV3


def _per_pixel_kernel(logits_ref, labels_ref, score_ref, loss_ref, *,
                      num_classes, ignore_index, lam):
    """Per-pixel OHEM score + large-margin cross-entropy.

    logits_ref: (C, T)  classes on sublanes, pixels on lanes
    labels_ref, score_ref, loss_ref: (1, T)  lane-dense
    """
    x = logits_ref[...].astype(jnp.float32)          # logits.float()
    lb = labels_ref[...]                             # (1, T) int32
    t = x.shape[1]

    ign = lb == ignore_index                         # (1, T)
    lb0 = jnp.where(ign, 0, lb)                      # safe gather index
    cls = jax.lax.broadcasted_iota(jnp.int32, (num_classes, t), 0)
    onehot = (cls == lb0).astype(jnp.float32)        # (C, T)
    not_y = 1.0 - onehot

    # ---- cross-entropy + GT probability (the OHEM score) ----
    # One (C,T) exp; p_gt = exp(-ce) avoids a second (C,T) multiply + sublane reduce.
    m1 = jnp.max(x, axis=0, keepdims=True)
    e1 = jnp.exp(x - m1)
    s1 = jnp.sum(e1, axis=0, keepdims=True)
    logit_gt = jnp.sum(x * onehot, axis=0, keepdims=True)
    ce = m1 + jnp.log(s1) - logit_gt                 # -log softmax(x)[y]
    p_gt = jnp.exp(-ce)                              # softmax(x)[y]

    # ---- large-margin term on target-masked logits; reuse one exp for q and log q ----
    lgts = x - onehot * 1.0e6
    m2 = jnp.max(lgts, axis=0, keepdims=True)
    e2 = jnp.exp(lgts - m2)
    s2 = jnp.sum(e2, axis=0, keepdims=True)
    log_q = (lgts - m2 - jnp.log(s2)) * not_y        # masked log softmax (0 at target)
    q = (e2 / s2) * not_y                            # masked softmax  (0 at target)
    coeff = 1.0 / (num_classes - 1.0)
    # (q - coeff) * log_q is already 0 at the target position (log_q == 0 there).
    mg = jnp.sum((q - coeff) * log_q, axis=0, keepdims=True) * (lam * 0.5)

    valid = jnp.where(ign, 0.0, 1.0)
    # sentinel 2.0 for ignored pixels -> never "hard" under strict '<'
    score_ref[...] = jnp.where(ign, 2.0, p_gt).astype(jnp.float32)
    loss_ref[...] = ((ce + mg) * valid).astype(jnp.float32)


def _choose_tile_hw(hw, num_classes, *, max_tile=8192, vmem_budget_bytes=16 << 20):
    """Pixels per block (lane axis).

    Bounded so the double-buffered (C, tile) f32 logits block stays well inside the
    per-core VMEM budget on every generation (v7x: 64 MiB physical / 32 MiB scoped).
    """
    cap = vmem_budget_bytes // (2 * 4 * max(num_classes, 1))   # 2 buffers * 4 B
    tile = max(128, (min(max_tile, cap) // 128) * 128)
    hw_ceil = ((hw + 127) // 128) * 128
    return min(tile, hw_ceil)


def ohem_large_margin_loss(logits_nchw, labels, *, score_thresh, n_min=None,
                           ignore_index=IGNORE_INDEX, lam=LAM, max_tile_hw=8192):
    N, C, H, W = logits_nchw.shape
    HW = H * W
    P = N * HW

    # Free views of the NCHW layout; the f32 cast happens inside the kernel on load.
    x = logits_nchw.reshape(N, C, HW)
    lb = labels.reshape(N, 1, HW).astype(jnp.int32)

    tile = _choose_tile_hw(HW, C, max_tile=max_tile_hw)
    grid = (N, pl.cdiv(HW, tile))   # no padding: Pallas masks the partial final block

    kernel = functools.partial(_per_pixel_kernel, num_classes=C,
                               ignore_index=ignore_index, lam=lam)
    score, loss_px = pl.pallas_call(
        kernel,
        out_shape=(jax.ShapeDtypeStruct((N, 1, HW), jnp.float32),
                   jax.ShapeDtypeStruct((N, 1, HW), jnp.float32)),
        grid_spec=pltpu.PrefetchScalarGridSpec(
            num_scalar_prefetch=0,
            grid=grid,
            in_specs=[pl.BlockSpec((None, C, tile), lambda n, t: (n, 0, t)),
                      pl.BlockSpec((None, 1, tile), lambda n, t: (n, 0, t))],
            out_specs=[pl.BlockSpec((None, 1, tile), lambda n, t: (n, 0, t)),
                       pl.BlockSpec((None, 1, tile), lambda n, t: (n, 0, t))]),
        compiler_params=pltpu.CompilerParams(
            dimension_semantics=("parallel", "parallel"),
            vmem_limit_bytes=32 * 1024 * 1024),
    )(x, lb)

    score_v = score.reshape(-1)       # exactly P entries, all real pixels
    loss_v = loss_px.reshape(-1)

    # ---- OHEM threshold selection (glue; mirrors ohem_cpp.score_ohem_label) ----
    if n_min is None:
        n_min = P // 16                              # labels.numel() // 16
    n_min = int(min(max(n_min, 0), P - 1))
    # k-th smallest score via top_k on negated scores (avoids a full O(P log P) sort).
    # TODO(synk): a two-pass histogram/quantile selection kernel could replace this if
    # top_k ever dominates end-to-end time for very large P.
    neg_topk, _ = jax.lax.top_k(-score_v, n_min + 1)
    kth = -neg_topk[n_min]
    thresh = jnp.where(kth < score_thresh, jnp.float32(score_thresh), kth)

    # ---- OHEM masked mean: single fused XLA reduction. ----
    # Ignored pixels carry score == 2.0 >= thresh and loss == 0, so the strict '<'
    # keeps them out of both the sum and the count.
    keep = (score_v < thresh).astype(jnp.float32)
    loss_sum = jnp.sum(loss_v * keep)
    cnt = jnp.maximum(jnp.sum(keep), 1.0)
    return loss_sum / cnt


class OhemLargeMarginLoss:
    """Thin functional mirror of the PyTorch module (no learnable parameters)."""

    def __init__(self, score_thresh, n_min=None, ignore_index=255):
        self.score_thresh = score_thresh
        self.n_min = n_min
        self.ignore_lb = ignore_index

    def __call__(self, logits, labels):
        return ohem_large_margin_loss(logits, labels, score_thresh=self.score_thresh,
                                      n_min=self.n_min, ignore_index=self.ignore_lb)


def _reference(logits_nchw, labels, score_thresh, ignore_index=IGNORE_INDEX, lam=LAM):
    """Pure-JAX reference of the same semantics (independent code path: transpose + sort)."""
    N, C, H, W = logits_nchw.shape
    x = jnp.transpose(logits_nchw, (0, 2, 3, 1)).reshape(-1, C).astype(jnp.float32)
    lb = labels.reshape(-1)
    ign = lb == ignore_index
    lb0 = jnp.where(ign, 0, lb)
    lse = jax.nn.logsumexp(x, axis=-1)
    logit_gt = jnp.take_along_axis(x, lb0[:, None], axis=-1)[:, 0]
    score = jnp.where(ign, 2.0, jnp.exp(logit_gt - lse))
    n_min = lb.shape[0] // 16
    kth = jnp.sort(score)[n_min]
    thr = jnp.where(kth < score_thresh, score_thresh, kth)
    keep = (score < thr) & (~ign)
    ce = lse - logit_gt
    onehot = jax.nn.one_hot(lb0, C, dtype=jnp.float32)
    lgts = x - onehot * 1.0e6
    logq = jax.nn.log_softmax(lgts, axis=-1)
    q = jnp.exp(logq)
    coeff = 1.0 / (C - 1.0)
    mg = jnp.sum((q - coeff) * logq * (1.0 - onehot), axis=-1) * (lam / 2.0)
    loss_px = ce + mg
    cnt = jnp.maximum(jnp.sum(keep.astype(jnp.float32)), 1.0)
    return jnp.sum(jnp.where(keep, loss_px, 0.0)) / cnt


if __name__ == "__main__":
    key = jax.random.PRNGKey(0)
    N, C, H, W = 2, 4, 16, 16
    k1, k2, k3 = jax.random.split(key, 3)
    logits = jax.random.normal(k1, (N, C, H, W), jnp.float32)
    labels = jax.random.randint(k2, (N, H, W), 0, C, jnp.int32)
    # sprinkle some ignored pixels to exercise ignore_index handling
    labels = jnp.where(jax.random.uniform(k3, (N, H, W)) < 0.1, IGNORE_INDEX, labels)

    crit = OhemLargeMarginLoss(score_thresh=0.7)
    loss = crit(logits, labels)
    loss = jax.block_until_ready(loss)

    ref = _reference(logits, labels, 0.7)
    assert jnp.allclose(loss, ref, atol=2e-4, rtol=2e-4), (loss, ref)
    print("KERNEL_OK")
</pallas_src>

<mosaic_0001>
module attributes {stable_mosaic.version = 11 : i64} {
  func.func @_per_pixel_kernel(%arg0: i32, %arg1: i32, %arg2: memref<1x4x256xf32, #tpu.memory_space<vmem>>, %arg3: memref<1x1x256xi32, #tpu.memory_space<vmem>>, %arg4: memref<1x1x256xf32, #tpu.memory_space<vmem>>, %arg5: memref<1x1x256xf32, #tpu.memory_space<vmem>>) attributes {dimension_semantics = [#tpu.dimension_semantics<parallel>, #tpu.dimension_semantics<parallel>], iteration_bounds = array<i64: 2, 1>, scalar_prefetch = 0 : i64, scratch_operands = 0 : i64, tpu.core_type = #tpu.core_type<tc>, window_params = [{transform_indices = @transform_0, window_bounds = array<i64: 1, 4, 256>}, {transform_indices = @transform_1, window_bounds = array<i64: 1, 1, 256>}, {transform_indices = @transform_2, window_bounds = array<i64: 1, 1, 256>}, {transform_indices = @transform_3, window_bounds = array<i64: 1, 1, 256>}]} {
    %c0 = arith.constant 0 : index
    %c0_0 = arith.constant 0 : index
    %c0_1 = arith.constant 0 : index
    %0 = vector.load %arg2[%c0, %c0_0, %c0_1] : memref<1x4x256xf32, #tpu.memory_space<vmem>>, vector<1x4x256xf32>
    %1 = vector.shape_cast %0 : vector<1x4x256xf32> to vector<4x256xf32>
    %c0_2 = arith.constant 0 : index
    %c0_3 = arith.constant 0 : index
    %c0_4 = arith.constant 0 : index
    %2 = vector.load %arg3[%c0_2, %c0_3, %c0_4] : memref<1x1x256xi32, #tpu.memory_space<vmem>>, vector<1x1x256xi32>
    %3 = vector.shape_cast %2 : vector<1x1x256xi32> to vector<1x256xi32>
    %c255_i32 = arith.constant 255 : i32
    %4 = vector.broadcast %c255_i32 : i32 to vector<1x256xi32>
    %5 = arith.cmpi eq, %3, %4 : vector<1x256xi32>
    %c0_i32 = arith.constant 0 : i32
    %6 = vector.broadcast %c0_i32 : i32 to vector<1x256xi32>
    %7 = arith.select %5, %6, %3 : vector<1x256xi1>, vector<1x256xi32>
    %8 = tpu.iota {dimensions = array<i32: 0>} : vector<4x256xi32>
    %9 = vector.broadcast %7 : vector<1x256xi32> to vector<4x256xi32>
    %10 = arith.cmpi eq, %8, %9 : vector<4x256xi32>
    %11 = arith.extui %10 : vector<4x256xi1> to vector<4x256xi32>
    %12 = arith.sitofp %11 : vector<4x256xi32> to vector<4x256xf32>
    %cst = arith.constant 1.000000e+00 : f32
    %13 = vector.broadcast %cst : f32 to vector<4x256xf32>
    %14 = arith.subf %13, %12 : vector<4x256xf32>
    %cst_5 = arith.constant dense<0xFF800000> : vector<256xf32>
    %15 = vector.multi_reduction <maximumf>, %1, %cst_5 [0] : vector<4x256xf32> to vector<256xf32>
    %16 = vector.shape_cast %15 : vector<256xf32> to vector<1x256xf32>
    %17 = vector.broadcast %16 : vector<1x256xf32> to vector<4x256xf32>
    %18 = arith.subf %1, %17 : vector<4x256xf32>
    %19 = math.exp %18 : vector<4x256xf32>
    %cst_6 = arith.constant dense<0.000000e+00> : vector<256xf32>
    %20 = vector.multi_reduction <add>, %19, %cst_6 [0] : vector<4x256xf32> to vector<256xf32>
    %21 = vector.shape_cast %20 : vector<256xf32> to vector<1x256xf32>
    %22 = arith.mulf %1, %12 : vector<4x256xf32>
    %cst_7 = arith.constant dense<0.000000e+00> : vector<256xf32>
    %23 = vector.multi_reduction <add>, %22, %cst_7 [0] : vector<4x256xf32> to vector<256xf32>
    %24 = vector.shape_cast %23 : vector<256xf32> to vector<1x256xf32>
    %25 = math.log %21 : vector<1x256xf32>
    %26 = arith.addf %16, %25 : vector<1x256xf32>
    %27 = arith.subf %26, %24 : vector<1x256xf32>
    %cst_8 = arith.constant 0.000000e+00 : f32
    %28 = vector.broadcast %cst_8 : f32 to vector<1x256xf32>
    %29 = arith.subf %28, %27 : vector<1x256xf32>
    %30 = math.exp %29 : vector<1x256xf32>
    %cst_9 = arith.constant 1.000000e+06 : f32
    %31 = vector.broadcast %cst_9 : f32 to vector<4x256xf32>
    %32 = arith.mulf %12, %31 : vector<4x256xf32>
    %33 = arith.subf %1, %32 : vector<4x256xf32>
    %cst_10 = arith.constant dense<0xFF800000> : vector<256xf32>
    %34 = vector.multi_reduction <maximumf>, %33, %cst_10 [0] : vector<4x256xf32> to vector<256xf32>
    %35 = vector.shape_cast %34 : vector<256xf32> to vector<1x256xf32>
    %36 = vector.broadcast %35 : vector<1x256xf32> to vector<4x256xf32>
    %37 = arith.subf %33, %36 : vector<4x256xf32>
    %38 = math.exp %37 : vector<4x256xf32>
    %cst_11 = arith.constant dense<0.000000e+00> : vector<256xf32>
    %39 = vector.multi_reduction <add>, %38, %cst_11 [0] : vector<4x256xf32> to vector<256xf32>
    %40 = vector.shape_cast %39 : vector<256xf32> to vector<1x256xf32>
    %41 = vector.broadcast %35 : vector<1x256xf32> to vector<4x256xf32>
    %42 = arith.subf %33, %41 : vector<4x256xf32>
    %43 = math.log %40 : vector<1x256xf32>
    %44 = vector.broadcast %43 : vector<1x256xf32> to vector<4x256xf32>
    %45 = arith.subf %42, %44 : vector<4x256xf32>
    %46 = arith.mulf %45, %14 : vector<4x256xf32>
    %47 = vector.broadcast %40 : vector<1x256xf32> to vector<4x256xf32>
    %48 = arith.divf %38, %47 : vector<4x256xf32>
    %49 = arith.mulf %48, %14 : vector<4x256xf32>
    %cst_12 = arith.constant 0.333333343 : f32
    %50 = vector.broadcast %cst_12 : f32 to vector<4x256xf32>
    %51 = arith.subf %49, %50 : vector<4x256xf32>
    %52 = arith.mulf %51, %46 : vector<4x256xf32>
    %cst_13 = arith.constant dense<0.000000e+00> : vector<256xf32>
    %53 = vector.multi_reduction <add>, %52, %cst_13 [0] : vector<4x256xf32> to vector<256xf32>
    %54 = vector.shape_cast %53 : vector<256xf32> to vector<1x256xf32>
    %cst_14 = arith.constant 1.500000e-01 : f32
    %55 = vector.broadcast %cst_14 : f32 to vector<1x256xf32>
    %56 = arith.mulf %54, %55 : vector<1x256xf32>
    %cst_15 = arith.constant 0.000000e+00 : f32
    %cst_16 = arith.constant 1.000000e+00 : f32
    %57 = vector.broadcast %cst_15 : f32 to vector<1x256xf32>
    %58 = vector.broadcast %cst_16 : f32 to vector<1x256xf32>
    %59 = arith.select %5, %57, %58 : vector<1x256xi1>, vector<1x256xf32>
    %cst_17 = arith.constant 2.000000e+00 : f32
    %60 = vector.broadcast %cst_17 : f32 to vector<1x256xf32>
    %61 = arith.select %5, %60, %30 : vector<1x256xi1>, vector<1x256xf32>
    %c0_18 = arith.constant 0 : index
    %c0_19 = arith.constant 0 : index
    %c0_20 = arith.constant 0 : index
    %62 = vector.load %arg4[%c0_18, %c0_19, %c0_20] : memref<1x1x256xf32, #tpu.memory_space<vmem>>, vector<1x1x256xf32>
    %63 = vector.shape_cast %62 : vector<1x1x256xf32> to vector<1x256xf32>
    %64 = vector.shape_cast %61 : vector<1x256xf32> to vector<1x1x256xf32>
    tpu.vector_store %arg4[%c0_18, %c0_19, %c0_20], %64 {strides = array<i32>} : memref<1x1x256xf32, #tpu.memory_space<vmem>>, vector<1x1x256xf32>,
    %65 = arith.addf %27, %56 : vector<1x256xf32>
    %66 = arith.mulf %65, %59 : vector<1x256xf32>
    %c0_21 = arith.constant 0 : index
    %c0_22 = arith.constant 0 : index
    %c0_23 = arith.constant 0 : index
    %67 = vector.load %arg5[%c0_21, %c0_22, %c0_23] : memref<1x1x256xf32, #tpu.memory_space<vmem>>, vector<1x1x256xf32>
    %68 = vector.shape_cast %67 : vector<1x1x256xf32> to vector<1x256xf32>
    %69 = vector.shape_cast %66 : vector<1x256xf32> to vector<1x1x256xf32>
    tpu.vector_store %arg5[%c0_21, %c0_22, %c0_23], %69 {strides = array<i32>} : memref<1x1x256xf32, #tpu.memory_space<vmem>>, vector<1x1x256xf32>,
    return
  }
  func.func @transform_0(%arg0: i32, %arg1: i32) -> (i32, i32, i32) {
    %c0_i32 = arith.constant 0 : i32
    %c0_i32_0 = arith.constant 0 : i32
    return %arg0, %c0_i32, %arg1 : i32, i32, i32
  }
  func.func @transform_1(%arg0: i32, %arg1: i32) -> (i32, i32, i32) {
    %c0_i32 = arith.constant 0 : i32
    %c0_i32_0 = arith.constant 0 : i32
    return %arg0, %c0_i32, %arg1 : i32, i32, i32
  }
  func.func @transform_2(%arg0: i32, %arg1: i32) -> (i32, i32, i32) {
    %c0_i32 = arith.constant 0 : i32
    %c0_i32_0 = arith.constant 0 : i32
    return %arg0, %c0_i32, %arg1 : i32, i32, i32
  }
  func.func @transform_3(%arg0: i32, %arg1: i32) -> (i32, i32, i32) {
    %c0_i32 = arith.constant 0 : i32
    %c0_i32_0 = arith.constant 0 : i32
    return %arg0, %c0_i32, %arg1 : i32, i32, i32
  }
}

</mosaic_0001>

<llo_original>
// kernel: tpu_custom_call.1
$region0: #{tpu_custom_call.1}
  #allocation0 [shape = 'u32[]', space=smem, size = 0x4, offset = 0x4, fixed_abs, tag = 'smem constant byte address 0x4 - core index']
  #allocation1 [shape = 'u32[144,128]{1,0:T(1,128)}', space=vmem, size = 0x12000, scoped, tag = 'internal scratch']
  %s0 = inlined_call_operand.hbm [shape: f32[2,4,256], index: 0, kind: input, shape index: {}]
  %s1 = inlined_call_operand.hbm [shape: s32[2,1,256], index: 1, kind: input, shape index: {}]
  %s2 = inlined_call_operand.hbm [shape: f32[2,1,256], index: 2, kind: output, shape index: {0}]
  %s3 = inlined_call_operand.hbm [shape: f32[2,1,256], index: 3, kind: output, shape index: {1}]
  %4 = xla_tuple %s2, %s3
  %s5 = sld [smem:[#allocation0]]
  $region57: #{tpu_custom_call.1} parent=0
    _
  %s7 = ssub.s32 1, %s5
  %s8 = scalar_select 0, %s7, %s5
  $region1: #{tpu_custom_call.1} parent=0
    #allocation2 [shape = 'u8[8192]{0}', space=vmem, size = 0x2000, scoped, tag = 'input window, operand 0']
    #allocation3 [shape = 's32[2]{0}', space=sflag, size = 0x8, scoped, tag = 'scoped memory for tpu_custom_call.1']
    #allocation4 [shape = 's32[2]{0}', space=sflag, size = 0x8, scoped, tag = 'scoped memory for tpu_custom_call.1']
    #allocation5 [shape = 'u8[2048]{0}', space=vmem, size = 0x800, scoped, tag = 'input window, operand 1']
    #allocation6 [shape = 's32[2]{0}', space=sflag, size = 0x8, scoped, tag = 'scoped memory for tpu_custom_call.1']
    #allocation7 [shape = 'u8[2048]{0}', space=vmem, size = 0x800, scoped, tag = 'output window, operand 0']
    #allocation8 [shape = 'u8[2048]{0}', space=vmem, size = 0x800, scoped, tag = 'output window, operand 1']
    #allocation9 [shape = 's32[2]{0}', space=sflag, size = 0x8, scoped, tag = 'scoped memory for tpu_custom_call.1']
    %9 = vsyncpa [#allocation3], 0
    %s10 = scalar_lea.sflag [#allocation3], 1
    %11 = vsyncpa %s10, 0
    %12 = vsyncpa [#allocation6], 0
    %s13 = scalar_lea.sflag [#allocation6], 1
    %14 = vsyncpa %s13, 0
    %15 = vsyncpa [#allocation4], 0
    %s16 = scalar_lea.sflag [#allocation4], 1
    %17 = vsyncpa %s16, 0
    %18 = vsyncpa [#allocation9], 0
    %s19 = scalar_lea.sflag [#allocation9], 1
    %20 = vsyncpa %s19, 0
    loop: start=0, step=1, limit=4
    $region2: #{tpu_custom_call.1} parent=1 // loop_pre_header
      _
    $region3: #{tpu_custom_call.1} parent=1 // loop_header
      %s22 = sphi 0, %s26
      %p23 = scmp.ge.s32.totalorder %s22, 4
      %s29 = sphi 0, %s41
      %s30 = sphi 0, %s37
      %s31 = sphi 0, %s29
      %s32 = sphi 0, %s30
      %s33 = sphi 0, %s31
      %s34 = sphi 0, %s32
      %s46 = sphi 0, %s48
      %s49 = sphi 0, %s46
      %s50 = sphi 0, %s49
      %s66 = sphi 0, %s50
      %s74 = sphi 0, %s76
      %s77 = sphi 0, %s74
      %s78 = sphi 0, %s77
      %s94 = sphi 0, %s78
      %s102 = sphi 0, %s104
      %s105 = sphi 0, %s102
      %s106 = sphi 0, %s105
      %s122 = sphi 0, %s106
      %s130 = sphi 0, %s132
      %s133 = sphi 0, %s130
      %s134 = sphi 0, %s133
      %s150 = sphi 0, %s134
    $region4: #{tpu_custom_call.1} parent=1 // loop_header_branch
      %25 = sbr.rel (%p23) target = $region8
    $region5: #{tpu_custom_call.1} parent=1 // loop_body
      %s27 = ssub.s32 %s22, 1
      %s28 = ssub.s32 %s22, 2
      %s35 = sadd.s32 1, %s30
      %p36 = scmp.ge.s32.totalorder %s35, 1
      %s37 = scalar_select %p36, 0, %s35
      %s38 = sadd.s32 1, %s29
      %s39 = scalar_select %p36, %s38, %s29
      %p40 = scmp.ge.s32.totalorder %s39, 2
      %s41 = scalar_select %p40, 0, %s39
      %s42 = ssub.s32 %s29, %s41
      %s43 = ssub.s32 %s30, %s37
      %s44 = sor.u32 %s42, %s43
      %p45 = scmp.eq.s32.totalorder %s44, 0
      %s47 = sadd.s32 %s46, 1
      %s48 = scalar_select %p45, %s46, %s47
      %p51 = pneg %p45
      %p52 = scmp.eq.s32.totalorder %s22, 1
      %p53 = por %p51, %p52
      %p54 = scmp.ne.s32.totalorder %s46, %s49
      %p55 = scmp.eq.s32.totalorder %s22, 0
      %p56 = por %p54, %p55
      %p57 = scmp.ne.s32.totalorder %s46, %s49
      %p58 = scmp.eq.s32.totalorder %s27, 1
      %p59 = por %p57, %p58
      %p60 = scmp.ne.s32.totalorder %s49, %s50
      %p61 = scmp.eq.s32.totalorder %s27, 0
      %p62 = por %p60, %p61
      %p63 = scmp.ne.s32.totalorder %s49, %s50
      %p64 = scmp.eq.s32.totalorder %s28, 1
      %p65 = por %p63, %p64
      %p67 = scmp.ne.s32.totalorder %s50, %s66
      %p68 = scmp.eq.s32.totalorder %s28, 0
      %p69 = por %p67, %p68
      %s70 = ssub.s32 %s29, %s41
      %s71 = ssub.s32 %s30, %s37
      %s72 = sor.u32 %s70, %s71
      %p73 = scmp.eq.s32.totalorder %s72, 0
      %s75 = sadd.s32 %s74, 1
      %s76 = scalar_select %p73, %s74, %s75
      %p79 = pneg %p73
      %p80 = scmp.eq.s32.totalorder %s22, 1
      %p81 = por %p79, %p80
      %p82 = scmp.ne.s32.totalorder %s74, %s77
      %p83 = scmp.eq.s32.totalorder %s22, 0
      %p84 = por %p82, %p83
      %p85 = scmp.ne.s32.totalorder %s74, %s77
      %p86 = scmp.eq.s32.totalorder %s27, 1
      %p87 = por %p85, %p86
      %p88 = scmp.ne.s32.totalorder %s77, %s78
      %p89 = scmp.eq.s32.totalorder %s27, 0
      %p90 = por %p88, %p89
      %p91 = scmp.ne.s32.totalorder %s77, %s78
      %p92 = scmp.eq.s32.totalorder %s28, 1
      %p93 = por %p91, %p92
      %p95 = scmp.ne.s32.totalorder %s78, %s94
      %p96 = scmp.eq.s32.totalorder %s28, 0
      %p97 = por %p95, %p96
      %s98 = ssub.s32 %s29, %s41
      %s99 = ssub.s32 %s30, %s37
      %s100 = sor.u32 %s98, %s99
      %p101 = scmp.eq.s32.totalorder %s100, 0
      %s103 = sadd.s32 %s102, 1
      %s104 = scalar_select %p101, %s102, %s103
      %p107 = pneg %p101
      %p108 = scmp.eq.s32.totalorder %s22, 1
      %p109 = por %p107, %p108
      %p110 = scmp.ne.s32.totalorder %s102, %s105
      %p111 = scmp.eq.s32.totalorder %s22, 0
      %p112 = por %p110, %p111
      %p113 = scmp.ne.s32.totalorder %s102, %s105
      %p114 = scmp.eq.s32.totalorder %s27, 1
      %p115 = por %p113, %p114
      %p116 = scmp.ne.s32.totalorder %s105, %s106
      %p117 = scmp.eq.s32.totalorder %s27, 0
      %p118 = por %p116, %p117
      %p119 = scmp.ne.s32.totalorder %s105, %s106
      %p120 = scmp.eq.s32.totalorder %s28, 1
      %p121 = por %p119, %p120
      %p123 = scmp.ne.s32.totalorder %s106, %s122
      %p124 = scmp.eq.s32.totalorder %s28, 0
      %p125 = por %p123, %p124
      %s126 = ssub.s32 %s29, %s41
      %s127 = ssub.s32 %s30, %s37
      %s128 = sor.u32 %s126, %s127
      %p129 = scmp.eq.s32.totalorder %s128, 0
      %s131 = sadd.s32 %s130, 1
      %s132 = scalar_select %p129, %s130, %s131
      %p135 = pneg %p129
      %p136 = scmp.eq.s32.totalorder %s22, 1
      %p137 = por %p135, %p136
      %p138 = scmp.ne.s32.totalorder %s130, %s133
      %p139 = scmp.eq.s32.totalorder %s22, 0
      %p140 = por %p138, %p139
      %p141 = scmp.ne.s32.totalorder %s130, %s133
      %p142 = scmp.eq.s32.totalorder %s27, 1
      %p143 = por %p141, %p142
      %p144 = scmp.ne.s32.totalorder %s133, %s134
      %p145 = scmp.eq.s32.totalorder %s27, 0
      %p146 = por %p144, %p145
      %p147 = scmp.ne.s32.totalorder %s133, %s134
      %p148 = scmp.eq.s32.totalorder %s28, 1
      %p149 = por %p147, %p148
      %p151 = scmp.ne.s32.totalorder %s134, %s150
      %p152 = scmp.eq.s32.totalorder %s28, 0
      %p153 = por %p151, %p152
      %p154 = scmp.le.s32.totalorder 1, %s22
      %p155 = scmp.lt.s32.totalorder %s22, 3
      %p156 = pnand %p154, %p155
      %p157 = pneg %p156
      // Predicated region
      $region9: #{tpu_custom_call.1} parent=5 // pred_check
        _
      $region10: #{tpu_custom_call.1} parent=5 // pred_check_branch
        %159 = sbr.rel (%p156) target = $region12
      $region11: #{tpu_custom_call.1} parent=5 // pred_region
        %s160 = ssub.s32 %s22, 1
      $region12: #{tpu_custom_call.1} parent=5 // pred_fallthru
        _
      %p161 = scmp.lt.s32.totalorder %s22, 2
      // Predicated region
      $region13: #{tpu_custom_call.1} parent=5 // pred_check
        %p162 = pneg %p161
      $region14: #{tpu_custom_call.1} parent=5 // pred_check_branch
        %164 = sbr.rel (%p162) target = $region16
      $region15: #{tpu_custom_call.1} parent=5 // pred_region
        // Predicated region
        $region17: #{tpu_custom_call.1} parent=15 // pred_check
          %p165 = pneg %p56
        $region18: #{tpu_custom_call.1} parent=15 // pred_check_branch
          %167 = sbr.rel (%p165) target = $region20
        $region19: #{tpu_custom_call.1} parent=15 // pred_region
          %s168 = sand.u32 %s46, 1
          %s169 = scalar_lea.sflag [#allocation3], %s168
          %s170 = sand.u32 %s46, 1
          %s171 = smul.addr %s170, 8
          %s172 = scalar_lea.vmem [#allocation2], %s171
          %s173 = smul.u32 2, %s30
          %s175 = ssub.s32 128, 128
          %176 = vsyncadd %s169, %s175
          %s177 = smul.addr %s29, 2
          %s178 = sadd.s32 %s173, %s177
          %s179 = smul.addr %s178, 64
          %s180 = scalar_lea.hbm %s0, %s179
          %s182 = sshll.u32 %s172, 4
          %s183 = int_to_ptr.vmem [resolvable:$true] %s182
          %185 = dma.hbm_to_vmem [thread:$0]  %s180, 128, %s183, %s169
        $region20: #{tpu_custom_call.1} parent=15 // pred_fallthru
          _
        // Predicated region
        $region21: #{tpu_custom_call.1} parent=15 // pred_check
          %p186 = pneg %p84
        $region22: #{tpu_custom_call.1} parent=15 // pred_check_branch
          %188 = sbr.rel (%p186) target = $region24
        $region23: #{tpu_custom_call.1} parent=15 // pred_region
          %s189 = sand.u32 %s74, 1
          %s190 = scalar_lea.sflag [#allocation6], %s189
          %s191 = sand.u32 %s74, 1
          %s192 = smul.addr %s191, 2
          %s193 = scalar_lea.vmem [#allocation5], %s192
          %s194 = smul.u32 2, %s30
          %s196 = ssub.s32 32, 32
          %197 = vsyncadd %s190, %s196
          %s198 = smul.addr %s29, 2
          %s199 = sadd.s32 %s194, %s198
          %s200 = smul.addr %s199, 16
          %s201 = scalar_lea.hbm %s1, %s200
          %s203 = sshll.u32 %s193, 4
          %s204 = int_to_ptr.vmem [resolvable:$true] %s203
          %206 = dma.hbm_to_vmem [thread:$0]  %s201, 32, %s204, %s190
        $region24: #{tpu_custom_call.1} parent=15 // pred_fallthru
          _
      $region16: #{tpu_custom_call.1} parent=5 // pred_fallthru
        _
      %p207 = scmp.le.s32.totalorder 1, %s22
      %p208 = scmp.lt.s32.totalorder %s22, 3
      %p209 = pnand %p207, %p208
      %p210 = pneg %p209
      // Predicated region
      $region25: #{tpu_custom_call.1} parent=5 // pred_check
        _
      $region26: #{tpu_custom_call.1} parent=5 // pred_check_branch
        %212 = sbr.rel (%p209) target = $region28
      $region27: #{tpu_custom_call.1} parent=5 // pred_region
        %s213 = ssub.s32 %s22, 1
        %s214 = sand.u32 %s49, 1
        %s215 = scalar_lea.sflag [#allocation3], %s214
        %s216 = sand.u32 %s49, 1
        %s217 = smul.addr %s216, 8
        %s218 = scalar_lea.vmem [#allocation2], %s217
        // Predicated region
        $region29: #{tpu_custom_call.1} parent=27 // pred_check
          %p219 = pneg %p62
        $region30: #{tpu_custom_call.1} parent=27 // pred_check_branch
          %221 = sbr.rel (%p219) target = $region32
        $region31: #{tpu_custom_call.1} parent=27 // pred_region
          %222 = dma.done %s215, 128
        $region32: #{tpu_custom_call.1} parent=27 // pred_fallthru
          _
        %s223 = sand.u32 %s77, 1
        %s224 = scalar_lea.sflag [#allocation6], %s223
        %s225 = sand.u32 %s77, 1
        %s226 = smul.addr %s225, 2
        %s227 = scalar_lea.vmem [#allocation5], %s226
        // Predicated region
        $region33: #{tpu_custom_call.1} parent=27 // pred_check
          %p228 = pneg %p90
        $region34: #{tpu_custom_call.1} parent=27 // pred_check_branch
          %230 = sbr.rel (%p228) target = $region36
        $region35: #{tpu_custom_call.1} parent=27 // pred_region
          %231 = dma.done %s224, 32
        $region36: #{tpu_custom_call.1} parent=27 // pred_fallthru
          _
        %s232 = sand.u32 %s49, 1
        %s233 = scalar_lea.sflag [#allocation3], %s232
        %s234 = sand.u32 %s49, 1
        %s235 = smul.addr %s234, 8
        %s236 = scalar_lea.vmem [#allocation2], %s235
        %p237 = pneg %p62
        %p238 = pneg %p59
        %s239 = sand.u32 %s77, 1
        %s240 = scalar_lea.sflag [#allocation6], %s239
        %s241 = sand.u32 %s77, 1
        %s242 = smul.addr %s241, 2
        %s243 = scalar_lea.vmem [#allocation5], %s242
        %p244 = pneg %p90
        %p245 = pneg %p87
        %p246 = pneg %p118
        %p247 = pneg %p115
        %s248 = sand.u32 %s105, 1
        %s249 = scalar_lea.sflag [#allocation4], %s248
        %s250 = sand.u32 %s105, 1
        %s251 = smul.addr %s250, 2
        %s252 = scalar_lea.vmem [#allocation7], %s251
        %p253 = pneg %p146
        %p254 = pneg %p143
        %s255 = sand.u32 %s133, 1
        %s256 = scalar_lea.sflag [#allocation9], %s255
        %s257 = sand.u32 %s133, 1
        %s258 = smul.addr %s257, 2
        %s259 = scalar_lea.vmem [#allocation8], %s258
        %s260 = smul.u32 2, %s32
        %s261 = smul.u32 2, %s32
        %s262 = smul.u32 2, %s32
        %s263 = smul.u32 2, %s32
        %v264 = vld [vmem:[%s218] sm:$0xff]
        %v265 = vld [vmem:[%s227] sm:$0x3]
        %vm266 = vcmp.eq.s32.totalorder %v265, 255
        %v267 = vsel %vm266, 0, %v265
        %v268 = vlaneseq
        %v269 = vshrl.u32 %v268, 7
        %v270 = vlaneseq
        %v271 = vshrl.u32 %v270, 7
        %v272 = vsub.s32 0, %v271
        %v273 = vrot.slane %v267, %v272
        %v274 = vlaneseq
        %v275 = vshrl.u32 %v274, 7
        %v276 = vsub.s32 1, %v275
        %v277 = vrot.slane %v267, %v276
        %vm278 = vcmp.eq.s32.totalorder %v269, %v273
        %vm279 = vcmp.eq.s32.totalorder %v269, %v277
        %v280 = vsel %vm278, 1, 0
        %v281 = vsel %vm279, 1, 0
        %v282 = vcvt.s32.f32 %v280
        %v283 = vcvt.s32.f32 %v281
        %v284 = vsub.f32 1.0, %v282
        %v285 = vsub.f32 1.0, %v283
        %v287 = vcombine.high %v264, %v264
        %vm289 = vcmask 1043456
        %v290 = vsel %vm289, %v264, -inf
        %v291 = vrot.slane %v290, 4
        %v292 = vmax.f32 %v290, %v291
        %v293 = vrot.slane %v292, 2
        %v294 = vmax.f32 %v292, %v293
        %v295 = vrot.slane %v294, 1
        %v296 = vmax.f32 %v294, %v295
        %v297 = vsel %vm289, %v287, -inf
        %v298 = vrot.slane %v297, 4
        %v299 = vmax.f32 %v297, %v298
        %v300 = vrot.slane %v299, 2
        %v301 = vmax.f32 %v299, %v300
        %v302 = vrot.slane %v301, 1
        %v303 = vmax.f32 %v301, %v302
        %v306 = vcombine.low %v296, %v303
        %v308 = vsub.f32 %v264, %v306
        %v309 = vmul.f32 %v308, 1.442695
        %v310 = vpow.pop %v309
        %v312 = vcombine.high %v310, %v310
        %v314 = vsel %vm289, %v310, 0.0
        %v315 = vrot.slane %v314, 4
        %v316 = vadd.f32 %v314, %v315
        %v317 = vrot.slane %v316, 2
        %v318 = vadd.f32 %v316, %v317
        %v319 = vrot.slane %v318, 1
        %v320 = vadd.f32 %v318, %v319
        %v321 = vsel %vm289, %v312, 0.0
        %v322 = vrot.slane %v321, 4
        %v323 = vadd.f32 %v321, %v322
        %v324 = vrot.slane %v323, 2
        %v325 = vadd.f32 %v323, %v324
        %v326 = vrot.slane %v325, 1
        %v327 = vadd.f32 %v325, %v326
        %v330 = vcombine.low %v282, %v283
        %v332 = vmul.f32 %v264, %v330
        %v334 = vcombine.high %v332, %v332
        %v336 = vsel %vm289, %v332, 0.0
        %v337 = vrot.slane %v336, 4
        %v338 = vadd.f32 %v336, %v337
        %v339 = vrot.slane %v338, 2
        %v340 = vadd.f32 %v338, %v339
        %v341 = vrot.slane %v340, 1
        %v342 = vadd.f32 %v340, %v341
        %v343 = vsel %vm289, %v334, 0.0
        %v344 = vrot.slane %v343, 4
        %v345 = vadd.f32 %v343, %v344
        %v346 = vrot.slane %v345, 2
        %v347 = vadd.f32 %v345, %v346
        %v348 = vrot.slane %v347, 1
        %v349 = vadd.f32 %v347, %v348
        %v350 = vlog2.pop %v320
        %v351 = vmul.f32 %v350, 0.6931472
        %v352 = vlog2.pop %v327
        %v353 = vmul.f32 %v352, 0.6931472
        %v354 = vadd.f32 %v296, %v351
        %v355 = vadd.f32 %v303, %v353
        %v356 = vsub.f32 %v354, %v342
        %v357 = vsub.f32 %v355, %v349
        %v358 = vsub.f32 0.0, %v356
        %v359 = vsub.f32 0.0, %v357
        %v360 = vmul.f32 %v358, 1.442695
        %v361 = vpow.pop %v360
        %v362 = vmul.f32 %v359, 1.442695
        %v363 = vpow.pop %v362
        %v364 = vmul.f32 %v282, 1000000.0
        %v365 = vmul.f32 %v283, 1000000.0
        %v368 = vcombine.low %v364, %v365
        %v370 = vsub.f32 %v264, %v368
        %v372 = vcombine.high %v370, %v370
        %v374 = vsel %vm289, %v370, -inf
        %v375 = vrot.slane %v374, 4
        %v376 = vmax.f32 %v374, %v375
        %v377 = vrot.slane %v376, 2
        %v378 = vmax.f32 %v376, %v377
        %v379 = vrot.slane %v378, 1
        %v380 = vmax.f32 %v378, %v379
        %v381 = vsel %vm289, %v372, -inf
        %v382 = vrot.slane %v381, 4
        %v383 = vmax.f32 %v381, %v382
        %v384 = vrot.slane %v383, 2
        %v385 = vmax.f32 %v383, %v384
        %v386 = vrot.slane %v385, 1
        %v387 = vmax.f32 %v385, %v386
        %v390 = vcombine.low %v380, %v387
        %v392 = vsub.f32 %v370, %v390
        %v393 = vmul.f32 %v392, 1.442695
        %v394 = vpow.pop %v393
        %v396 = vcombine.high %v394, %v394
        %v398 = vsel %vm289, %v394, 0.0
        %v399 = vrot.slane %v398, 4
        %v400 = vadd.f32 %v398, %v399
        %v401 = vrot.slane %v400, 2
        %v402 = vadd.f32 %v400, %v401
        %v403 = vrot.slane %v402, 1
        %v404 = vadd.f32 %v402, %v403
        %v405 = vsel %vm289, %v396, 0.0
        %v406 = vrot.slane %v405, 4
        %v407 = vadd.f32 %v405, %v406
        %v408 = vrot.slane %v407, 2
        %v409 = vadd.f32 %v407, %v408
        %v410 = vrot.slane %v409, 1
        %v411 = vadd.f32 %v409, %v410
        %v412 = vlog2.pop %v404
        %v413 = vmul.f32 %v412, 0.6931472
        %v414 = vlog2.pop %v411
        %v415 = vmul.f32 %v414, 0.6931472
        %v418 = vcombine.low %v413, %v415
        %v420 = vsub.f32 %v392, %v418
        %v423 = vcombine.low %v284, %v285
        %v425 = vmul.f32 %v420, %v423
        %v428 = vcombine.low %v404, %v411
        %v430 = vrcp.pop %v428
        %v431 = vmul.f32 %v394, %v430
        %v432 = vmul.f32 %v431, %v423
        %v433 = vsub.f32 %v432, 0.33333334
        %v434 = vmul.f32 %v433, %v425
        %v436 = vcombine.high %v434, %v434
        %v438 = vsel %vm289, %v434, 0.0
        %v439 = vrot.slane %v438, 4
        %v440 = vadd.f32 %v438, %v439
        %v441 = vrot.slane %v440, 2
        %v442 = vadd.f32 %v440, %v441
        %v443 = vrot.slane %v442, 1
        %v444 = vadd.f32 %v442, %v443
        %v445 = vsel %vm289, %v436, 0.0
        %v446 = vrot.slane %v445, 4
        %v447 = vadd.f32 %v445, %v446
        %v448 = vrot.slane %v447, 2
        %v449 = vadd.f32 %v447, %v448
        %v450 = vrot.slane %v449, 1
        %v451 = vadd.f32 %v449, %v450
        %v452 = vmul.f32 %v444, 0.15
        %v453 = vmul.f32 %v451, 0.15
        %v454 = vsel %vm266, 0.0, 1.0
        %v457 = vcombine.low %v361, %v363
        %v459 = vunpack.c.l.s4 1966171168
        %v460 = vunpack.c.0.s8 %v459
        %v461 = vlaneseq
        %v462 = vshrl.u32 %v461, 7
        %v463 = vsub.s32 %v460, %v462
        %v464 = vrot.slane %v457, %v463
        %v466 = vunpack.c.l.s4 1966171168
        %v467 = vunpack.c.0.s8 %v466
        %v468 = vlaneseq
        %v469 = vshrl.u32 %v468, 7
        %v470 = vsub.s32 %v467, %v469
        %v471 = vrot.slane %v464, %v470
        %v473 = vsel %vm266, 2.0, %v471
        %v474 = vlaneseq
        %vm475 = vcmp.ge.s32.totalorder %v474, 0
        %vm476 = vcmp.lt.s32.totalorder %v474, 256
        %vm477 = vmand %vm475, %vm476
        %478 = vst.msk [vmem:[%s252] sm:$0x3] %vm477, %v473
        %v479 = vadd.f32 %v356, %v452
        %v480 = vadd.f32 %v357, %v453
        %v482 = vlaneseq
        %v483 = vshrl.u32 %v482, 7
        %v484 = vsub.s32 0, %v483
        %v485 = vrot.slane %v454, %v484
        %v486 = vlaneseq
        %v487 = vshrl.u32 %v486, 7
        %v488 = vsub.s32 1, %v487
        %v489 = vrot.slane %v454, %v488
        %v492 = vmul.f32 %v479, %v485
        %v493 = vmul.f32 %v480, %v489
        %v496 = vcombine.low %v492, %v493
        %v498 = vunpack.c.l.s4 1966171168
        %v499 = vunpack.c.0.s8 %v498
        %v500 = vlaneseq
        %v501 = vshrl.u32 %v500, 7
        %v502 = vsub.s32 %v499, %v501
        %v503 = vrot.slane %v496, %v502
        %v505 = vunpack.c.l.s4 1966171168
        %v506 = vunpack.c.0.s8 %v505
        %v507 = vlaneseq
        %v508 = vshrl.u32 %v507, 7
        %v509 = vsub.s32 %v506, %v508
        %v510 = vrot.slane %v503, %v509
        %512 = vst.msk [vmem:[%s259] sm:$0x3] %vm477, %v510
        %s513 = sand.u32 %s105, 1
        %s514 = scalar_lea.sflag [#allocation4], %s513
        %s515 = sand.u32 %s105, 1
        %s516 = smul.addr %s515, 2
        %s517 = scalar_lea.vmem [#allocation7], %s516
        %s518 = sand.u32 %s133, 1
        %s519 = scalar_lea.sflag [#allocation9], %s518
        %s520 = sand.u32 %s133, 1
        %s521 = smul.addr %s520, 2
        %s522 = scalar_lea.vmem [#allocation8], %s521
        // Predicated region
        $region37: #{tpu_custom_call.1} parent=27 // pred_check
          %p523 = pneg %p115
        $region38: #{tpu_custom_call.1} parent=27 // pred_check_branch
          %525 = sbr.rel (%p523) target = $region40
        $region39: #{tpu_custom_call.1} parent=27 // pred_region
          %s526 = smul.u32 2, %s32
          %s528 = ssub.s32 32, 32
          %529 = vsyncadd %s514, %s528
          %s530 = smul.addr %s31, 2
          %s531 = sadd.s32 %s526, %s530
          %s532 = smul.addr %s531, 16
          %s533 = scalar_lea.hbm %s2, %s532
          %s535 = sshll.u32 %s517, 4
          %s536 = int_to_ptr.vmem [resolvable:$true] %s535
          %538 = dma.vmem_to_hbm [thread:$0]  %s536, 32, %s533, %s514
        $region40: #{tpu_custom_call.1} parent=27 // pred_fallthru
          _
        // Predicated region
        $region41: #{tpu_custom_call.1} parent=27 // pred_check
          %p539 = pneg %p143
        $region42: #{tpu_custom_call.1} parent=27 // pred_check_branch
          %541 = sbr.rel (%p539) target = $region44
        $region43: #{tpu_custom_call.1} parent=27 // pred_region
          %s542 = smul.u32 2, %s32
          %s544 = ssub.s32 32, 32
          %545 = vsyncadd %s519, %s544
          %s546 = smul.addr %s31, 2
          %s547 = sadd.s32 %s542, %s546
          %s548 = smul.addr %s547, 16
          %s549 = scalar_lea.hbm %s3, %s548
          %s551 = sshll.u32 %s522, 4
          %s552 = int_to_ptr.vmem [resolvable:$true] %s551
          %554 = dma.vmem_to_hbm [thread:$0]  %s552, 32, %s549, %s519
        $region44: #{tpu_custom_call.1} parent=27 // pred_fallthru
          _
      $region28: #{tpu_custom_call.1} parent=5 // pred_fallthru
        _
      %p555 = scmp.le.s32.totalorder 2, %s22
      // Predicated region
      $region45: #{tpu_custom_call.1} parent=5 // pred_check
        %p556 = pneg %p555
      $region46: #{tpu_custom_call.1} parent=5 // pred_check_branch
        %558 = sbr.rel (%p556) target = $region48
      $region47: #{tpu_custom_call.1} parent=5 // pred_region
        %s559 = ssub.s32 %s22, 2
        // Predicated region
        $region49: #{tpu_custom_call.1} parent=47 // pred_check
          %p560 = pneg %p121
        $region50: #{tpu_custom_call.1} parent=47 // pred_check_branch
          %562 = sbr.rel (%p560) target = $region52
        $region51: #{tpu_custom_call.1} parent=47 // pred_region
          %s563 = sand.u32 %s106, 1
          %s564 = scalar_lea.sflag [#allocation4], %s563
          %s565 = sand.u32 %s106, 1
          %s566 = smul.addr %s565, 2
          %s567 = scalar_lea.vmem [#allocation7], %s566
          %568 = dma.done %s564, 32
        $region52: #{tpu_custom_call.1} parent=47 // pred_fallthru
          _
        // Predicated region
        $region53: #{tpu_custom_call.1} parent=47 // pred_check
          %p569 = pneg %p149
        $region54: #{tpu_custom_call.1} parent=47 // pred_check_branch
          %571 = sbr.rel (%p569) target = $region56
        $region55: #{tpu_custom_call.1} parent=47 // pred_region
          %s572 = sand.u32 %s134, 1
          %s573 = scalar_lea.sflag [#allocation9], %s572
          %s574 = sand.u32 %s134, 1
          %s575 = smul.addr %s574, 2
          %s576 = scalar_lea.vmem [#allocation8], %s575
          %577 = dma.done %s573, 32
        $region56: #{tpu_custom_call.1} parent=47 // pred_fallthru
          _
      $region48: #{tpu_custom_call.1} parent=5 // pred_fallthru
        _
    $region6: #{tpu_custom_call.1} parent=1 // loop_footer
      %s26 = sadd.s32 1, %s22
    $region7: #{tpu_custom_call.1} parent=1 // loop_footer_branch
      %21 = sbr.rel target = $region3
    $region8: #{tpu_custom_call.1} parent=1 // loop_exit
      _
    %578 = vsyncpa [#allocation3], 1
    %s579 = scalar_lea.sflag [#allocation3], 1
    %580 = vsyncpa %s579, 1
    %581 = vsyncpa [#allocation6], 1
    %s582 = scalar_lea.sflag [#allocation6], 1
    %583 = vsyncpa %s582, 1
    %584 = vsyncpa [#allocation4], 1
    %s585 = scalar_lea.sflag [#allocation4], 1
    %586 = vsyncpa %s585, 1
    %587 = vsyncpa [#allocation9], 1
    %s588 = scalar_lea.sflag [#allocation9], 1
    %589 = vsyncpa %s588, 1

</llo_original>
